<compile_context>
chip_gen: v5e
topology: v5e:2x2
jax: 0.10.0
libtpu: 0.0.40
codegen_flags: <defaults>
</compile_context>

<pallas_src>
import jax
import jax.numpy as jnp
from jax.experimental import pallas as pl
from jax.experimental.pallas import tpu as pltpu


def _round_up(x, m):
    return ((x + m - 1) // m) * m


def mlp_kernel(x_ref, w1_ref, b1_ref, w2_ref, b2_ref, w3_ref, b3_ref, o_ref):
    # layer1: Linear + ReLU   (bf16 operands, f32 accumulate, f32 elementwise)
    x = x_ref[...].astype(jnp.bfloat16)
    h1 = jnp.dot(x, w1_ref[...], preferred_element_type=jnp.float32)
    h1 = jnp.maximum(h1 + b1_ref[...], 0.0)
    # layer2: Linear + ReLU
    h2 = jnp.dot(h1.astype(jnp.bfloat16), w2_ref[...],
                 preferred_element_type=jnp.float32)
    h2 = jnp.maximum(h2 + b2_ref[...], 0.0)
    # layer3: Linear (no activation); output slab is lane-dense (padded to 128)
    out = jnp.dot(h2.astype(jnp.bfloat16), w3_ref[...],
                  preferred_element_type=jnp.float32) + b3_ref[...]
    o_ref[...] = out.astype(o_ref.dtype)


def _pick_batch_tile(B):
    # Single tile for small batches (minimal padding), 512-row tiles otherwise
    # (big enough to amortize per-step overhead, small enough to double-buffer
    # comfortably inside v7x's 64 MiB VMEM).
    if B <= 1024:
        return _round_up(B, 8)
    return 512


@jax.jit
def net_forward(x, params):
    w1, b1, w2, b2, w3, b3 = params
    B, in_dim = x.shape
    h1_dim = w1.shape[1]
    h2_dim = w2.shape[1]
    out_dim = w3.shape[1]

    # --- lane-dense output: pad final layer's output features to a multiple of 128 ---
    out_pad = _round_up(out_dim, 128)
    if out_pad != out_dim:
        w3 = jnp.pad(w3, ((0, 0), (0, out_pad - out_dim)))
        b3 = jnp.pad(b3, ((0, 0), (0, out_pad - out_dim)))

    # --- bf16 weights for the MXU (f32 accumulate inside the kernel); biases stay f32 ---
    w1b = w1.astype(jnp.bfloat16)
    w2b = w2.astype(jnp.bfloat16)
    w3b = w3.astype(jnp.bfloat16)

    # --- adaptive batch tiling; pad B up to a multiple of the batch tile ---
    tm = _pick_batch_tile(B)
    B_pad = _round_up(B, tm)
    if B_pad != B:
        x = jnp.pad(x, ((0, B_pad - B), (0, 0)))
    num_tiles = B_pad // tm

    resident = lambda shape: pl.BlockSpec(shape, lambda i: (0, 0))

    flops = 2 * B_pad * (in_dim * h1_dim + h1_dim * h2_dim + h2_dim * out_pad)
    bytes_accessed = (
        B_pad * in_dim * 4 + B_pad * out_pad * 4
        + 2 * (in_dim * h1_dim + h1_dim * h2_dim + h2_dim * out_pad)
        + 4 * (h1_dim + h2_dim + out_pad)
    )

    out_padded = pl.pallas_call(
        mlp_kernel,
        out_shape=jax.ShapeDtypeStruct((B_pad, out_pad), jnp.float32),
        grid_spec=pl.GridSpec(
            grid=(num_tiles,),
            in_specs=[
                pl.BlockSpec((tm, in_dim), lambda i: (i, 0)),   # x: tiled over batch
                resident((in_dim, h1_dim)), resident((1, h1_dim)),
                resident((h1_dim, h2_dim)), resident((1, h2_dim)),
                resident((h2_dim, out_pad)), resident((1, out_pad)),
            ],
            out_specs=pl.BlockSpec((tm, out_pad), lambda i: (i, 0)),
        ),
        compiler_params=pltpu.CompilerParams(
            dimension_semantics=("parallel",),
            vmem_limit_bytes=32 * 1024 * 1024,  # sized for v7x's smaller VMEM; tiny here
        ),
        cost_estimate=pl.CostEstimate(
            flops=flops, transcendentals=0, bytes_accessed=bytes_accessed),
    )(x, w1b, b1, w2b, b2, w3b, b3)

    # strip batch + lane padding
    return out_padded[:B, :out_dim]


def init_linear(key, fan_in, fan_out):
    # Mimic PyTorch nn.Linear default init: U(-1/sqrt(fan_in), 1/sqrt(fan_in)),
    # stored transposed as (fan_in, fan_out); bias kept as a (1, fan_out) 2-D tile.
    kw, kb = jax.random.split(key)
    bound = 1.0 / jnp.sqrt(jnp.float32(fan_in))
    w = jax.random.uniform(kw, (fan_in, fan_out), jnp.float32, -bound, bound)
    b = jax.random.uniform(kb, (1, fan_out), jnp.float32, -bound, bound)
    return w, b


def reference_forward(x, params):
    # Same math as the kernel (bf16 operands, f32 accumulate) so the comparison is tight.
    w1, b1, w2, b2, w3, b3 = params
    bf = jnp.bfloat16
    h1 = jnp.maximum(
        jnp.dot(x.astype(bf), w1.astype(bf), preferred_element_type=jnp.float32) + b1, 0.0)
    h2 = jnp.maximum(
        jnp.dot(h1.astype(bf), w2.astype(bf), preferred_element_type=jnp.float32) + b2, 0.0)
    return jnp.dot(h2.astype(bf), w3.astype(bf),
                   preferred_element_type=jnp.float32) + b3


if __name__ == "__main__":
    # Shapes consistent with Net(in_dim, n_hidden_1, n_hidden_2, out_dim).
    # batch=200 is not a multiple of 8/128, exercising the pad/slice path.
    batch, in_dim, n_hidden_1, n_hidden_2, out_dim = 200, 32, 64, 64, 16

    key = jax.random.PRNGKey(0)
    k_x, k1, k2, k3 = jax.random.split(key, 4)

    x = jax.random.normal(k_x, (batch, in_dim), jnp.float32)
    w1, b1 = init_linear(k1, in_dim, n_hidden_1)
    w2, b2 = init_linear(k2, n_hidden_1, n_hidden_2)
    w3, b3 = init_linear(k3, n_hidden_2, out_dim)
    params = (w1, b1, w2, b2, w3, b3)

    out = net_forward(x, params)
    out = jax.block_until_ready(out)

    ref = reference_forward(x, params)
    assert out.shape == (batch, out_dim)
    assert jnp.allclose(out, ref, atol=1e-3, rtol=1e-3)

    print("KERNEL_OK")
</pallas_src>

<mosaic_0001>
module attributes {stable_mosaic.version = 11 : i64} {
  func.func @mlp_kernel(%arg0: i32, %arg1: memref<200x32xf32, #tpu.memory_space<vmem>>, %arg2: memref<32x64xbf16, #tpu.memory_space<vmem>>, %arg3: memref<1x64xf32, #tpu.memory_space<vmem>>, %arg4: memref<64x64xbf16, #tpu.memory_space<vmem>>, %arg5: memref<1x64xf32, #tpu.memory_space<vmem>>, %arg6: memref<64x128xbf16, #tpu.memory_space<vmem>>, %arg7: memref<1x128xf32, #tpu.memory_space<vmem>>, %arg8: memref<200x128xf32, #tpu.memory_space<vmem>>) attributes {dimension_semantics = [#tpu.dimension_semantics<parallel>], iteration_bounds = array<i64: 1>, scalar_prefetch = 0 : i64, scratch_operands = 0 : i64, tpu.core_type = #tpu.core_type<tc>, window_params = [{transform_indices = @transform_0, window_bounds = array<i64: 200, 32>}, {pipeline_mode = #tpu.pipeline_mode<synchronous>, transform_indices = @transform_1, window_bounds = array<i64: 32, 64>}, {pipeline_mode = #tpu.pipeline_mode<synchronous>, transform_indices = @transform_2, window_bounds = array<i64: 1, 64>}, {pipeline_mode = #tpu.pipeline_mode<synchronous>, transform_indices = @transform_3, window_bounds = array<i64: 64, 64>}, {pipeline_mode = #tpu.pipeline_mode<synchronous>, transform_indices = @transform_4, window_bounds = array<i64: 1, 64>}, {pipeline_mode = #tpu.pipeline_mode<synchronous>, transform_indices = @transform_5, window_bounds = array<i64: 64, 128>}, {pipeline_mode = #tpu.pipeline_mode<synchronous>, transform_indices = @transform_6, window_bounds = array<i64: 1, 128>}, {transform_indices = @transform_7, window_bounds = array<i64: 200, 128>}]} {
    %c0 = arith.constant 0 : index
    %c0_0 = arith.constant 0 : index
    %0 = vector.load %arg1[%c0, %c0_0] : memref<200x32xf32, #tpu.memory_space<vmem>>, vector<200x32xf32>
    %1 = arith.truncf %0 : vector<200x32xf32> to vector<200x32xbf16>
    %c0_1 = arith.constant 0 : index
    %c0_2 = arith.constant 0 : index
    %2 = vector.load %arg2[%c0_1, %c0_2] : memref<32x64xbf16, #tpu.memory_space<vmem>>, vector<32x64xbf16>
    %cst = arith.constant dense<0.000000e+00> : vector<200x64xf32>
    %3 = tpu.matmul %1, %2, %cst {dimension_numbers = #tpu.dot_dimension_numbers<[1], [0], [0], [1], [0, 0, 1, 1], [], []>} : vector<200x32xbf16>, vector<32x64xbf16>, vector<200x64xf32> -> vector<200x64xf32>
    %c0_3 = arith.constant 0 : index
    %c0_4 = arith.constant 0 : index
    %4 = vector.load %arg3[%c0_3, %c0_4] : memref<1x64xf32, #tpu.memory_space<vmem>>, vector<1x64xf32>
    %5 = vector.broadcast %4 : vector<1x64xf32> to vector<200x64xf32>
    %6 = arith.addf %3, %5 : vector<200x64xf32>
    %cst_5 = arith.constant 0.000000e+00 : f32
    %7 = vector.broadcast %cst_5 : f32 to vector<200x64xf32>
    %8 = arith.maximumf %6, %7 : vector<200x64xf32>
    %9 = arith.truncf %8 : vector<200x64xf32> to vector<200x64xbf16>
    %c0_6 = arith.constant 0 : index
    %c0_7 = arith.constant 0 : index
    %10 = vector.load %arg4[%c0_6, %c0_7] : memref<64x64xbf16, #tpu.memory_space<vmem>>, vector<64x64xbf16>
    %cst_8 = arith.constant dense<0.000000e+00> : vector<200x64xf32>
    %11 = tpu.matmul %9, %10, %cst_8 {dimension_numbers = #tpu.dot_dimension_numbers<[1], [0], [0], [1], [0, 0, 1, 1], [], []>} : vector<200x64xbf16>, vector<64x64xbf16>, vector<200x64xf32> -> vector<200x64xf32>
    %c0_9 = arith.constant 0 : index
    %c0_10 = arith.constant 0 : index
    %12 = vector.load %arg5[%c0_9, %c0_10] : memref<1x64xf32, #tpu.memory_space<vmem>>, vector<1x64xf32>
    %13 = vector.broadcast %12 : vector<1x64xf32> to vector<200x64xf32>
    %14 = arith.addf %11, %13 : vector<200x64xf32>
    %cst_11 = arith.constant 0.000000e+00 : f32
    %15 = vector.broadcast %cst_11 : f32 to vector<200x64xf32>
    %16 = arith.maximumf %14, %15 : vector<200x64xf32>
    %17 = arith.truncf %16 : vector<200x64xf32> to vector<200x64xbf16>
    %c0_12 = arith.constant 0 : index
    %c0_13 = arith.constant 0 : index
    %18 = vector.load %arg6[%c0_12, %c0_13] : memref<64x128xbf16, #tpu.memory_space<vmem>>, vector<64x128xbf16>
    %cst_14 = arith.constant dense<0.000000e+00> : vector<200x128xf32>
    %19 = tpu.matmul %17, %18, %cst_14 {dimension_numbers = #tpu.dot_dimension_numbers<[1], [0], [0], [1], [0, 0, 1, 1], [], []>} : vector<200x64xbf16>, vector<64x128xbf16>, vector<200x128xf32> -> vector<200x128xf32>
    %c0_15 = arith.constant 0 : index
    %c0_16 = arith.constant 0 : index
    %20 = vector.load %arg7[%c0_15, %c0_16] : memref<1x128xf32, #tpu.memory_space<vmem>>, vector<1x128xf32>
    %21 = vector.broadcast %20 : vector<1x128xf32> to vector<200x128xf32>
    %22 = arith.addf %19, %21 : vector<200x128xf32>
    %c0_17 = arith.constant 0 : index
    %c0_18 = arith.constant 0 : index
    %23 = vector.load %arg8[%c0_17, %c0_18] : memref<200x128xf32, #tpu.memory_space<vmem>>, vector<200x128xf32>
    tpu.vector_store %arg8[%c0_17, %c0_18], %22 {strides = array<i32>} : memref<200x128xf32, #tpu.memory_space<vmem>>, vector<200x128xf32>,
    return
  }
  func.func @transform_0(%arg0: i32) -> (i32, i32) {
    %c0_i32 = arith.constant 0 : i32
    %c0_i32_0 = arith.constant 0 : i32
    return %arg0, %c0_i32 : i32, i32
  }
  func.func @transform_1(%arg0: i32) -> (i32, i32) {
    %c0_i32 = arith.constant 0 : i32
    %c0_i32_0 = arith.constant 0 : i32
    %c0_i32_1 = arith.constant 0 : i32
    return %c0_i32, %c0_i32_0 : i32, i32
  }
  func.func @transform_2(%arg0: i32) -> (i32, i32) {
    %c0_i32 = arith.constant 0 : i32
    %c0_i32_0 = arith.constant 0 : i32
    %c0_i32_1 = arith.constant 0 : i32
    return %c0_i32, %c0_i32_0 : i32, i32
  }
  func.func @transform_3(%arg0: i32) -> (i32, i32) {
    %c0_i32 = arith.constant 0 : i32
    %c0_i32_0 = arith.constant 0 : i32
    %c0_i32_1 = arith.constant 0 : i32
    return %c0_i32, %c0_i32_0 : i32, i32
  }
  func.func @transform_4(%arg0: i32) -> (i32, i32) {
    %c0_i32 = arith.constant 0 : i32
    %c0_i32_0 = arith.constant 0 : i32
    %c0_i32_1 = arith.constant 0 : i32
    return %c0_i32, %c0_i32_0 : i32, i32
  }
  func.func @transform_5(%arg0: i32) -> (i32, i32) {
    %c0_i32 = arith.constant 0 : i32
    %c0_i32_0 = arith.constant 0 : i32
    %c0_i32_1 = arith.constant 0 : i32
    return %c0_i32, %c0_i32_0 : i32, i32
  }
  func.func @transform_6(%arg0: i32) -> (i32, i32) {
    %c0_i32 = arith.constant 0 : i32
    %c0_i32_0 = arith.constant 0 : i32
    %c0_i32_1 = arith.constant 0 : i32
    return %c0_i32, %c0_i32_0 : i32, i32
  }
  func.func @transform_7(%arg0: i32) -> (i32, i32) {
    %c0_i32 = arith.constant 0 : i32
    %c0_i32_0 = arith.constant 0 : i32
    return %arg0, %c0_i32 : i32, i32
  }
}

</mosaic_0001>

<llo_original>
// kernel: net_forward.1
$region0: #{net_forward.1}
  #allocation0 [shape = 'u32[]', space=smem, size = 0x4, offset = 0x4, fixed_abs, tag = 'smem constant byte address 0x4 - core index']
  #allocation1 [shape = 'u32[72,128]{1,0:T(1,128)}', space=vmem, size = 0x9000, scoped, tag = 'internal scratch']
  %s0 = inlined_call_operand.vmem [shape: f32[200,32], index: 0, kind: input, shape index: {}]
  %s1 = inlined_call_operand.vmem [shape: bf16[32,64], index: 1, kind: input, shape index: {}]
  %s2 = inlined_call_operand.vmem [shape: f32[1,64], index: 2, kind: input, shape index: {}]
  %s3 = inlined_call_operand.vmem [shape: bf16[64,64], index: 3, kind: input, shape index: {}]
  %s4 = inlined_call_operand.vmem [shape: f32[1,64], index: 4, kind: input, shape index: {}]
  %s5 = inlined_call_operand.vmem [shape: bf16[64,128], index: 5, kind: input, shape index: {}]
  %s6 = inlined_call_operand.vmem [shape: f32[1,128], index: 6, kind: input, shape index: {}]
  %s7 = inlined_call_operand.vmem [shape: f32[200,128], index: 7, kind: output, shape index: {}]
  %s8 = sld [smem:[#allocation0]]
  $region38: #{net_forward.1} parent=0
    _
  %s10 = ssub.s32 1, %s8
  %s11 = scalar_select 0, %s10, %s8
  // Predicated region
  $region2: #{net_forward.1} parent=0 // pred_check
    _
  $region3: #{net_forward.1} parent=0 // pred_check_branch
    %13 = sbr.rel (0) target = $region5
  $region4: #{net_forward.1} parent=0 // pred_region
    _
  $region5: #{net_forward.1} parent=0 // pred_fallthru
    _
  // Predicated region
  $region6: #{net_forward.1} parent=0 // pred_check
    _
  $region7: #{net_forward.1} parent=0 // pred_check_branch
    %15 = sbr.rel (0) target = $region9
  $region8: #{net_forward.1} parent=0 // pred_region
    _
  $region9: #{net_forward.1} parent=0 // pred_fallthru
    _
  // Predicated region
  $region10: #{net_forward.1} parent=0 // pred_check
    _
  $region11: #{net_forward.1} parent=0 // pred_check_branch
    %17 = sbr.rel (0) target = $region13
  $region12: #{net_forward.1} parent=0 // pred_region
    _
  $region13: #{net_forward.1} parent=0 // pred_fallthru
    _
  // Predicated region
  $region14: #{net_forward.1} parent=0 // pred_check
    _
  $region15: #{net_forward.1} parent=0 // pred_check_branch
    %19 = sbr.rel (0) target = $region17
  $region16: #{net_forward.1} parent=0 // pred_region
    _
  $region17: #{net_forward.1} parent=0 // pred_fallthru
    _
  // Predicated region
  $region18: #{net_forward.1} parent=0 // pred_check
    _
  $region19: #{net_forward.1} parent=0 // pred_check_branch
    %21 = sbr.rel (0) target = $region21
  $region20: #{net_forward.1} parent=0 // pred_region
    _
  $region21: #{net_forward.1} parent=0 // pred_fallthru
    _
  // Predicated region
  $region22: #{net_forward.1} parent=0 // pred_check
    _
  $region23: #{net_forward.1} parent=0 // pred_check_branch
    %23 = sbr.rel (0) target = $region25
  $region24: #{net_forward.1} parent=0 // pred_region
    _
  $region25: #{net_forward.1} parent=0 // pred_fallthru
    _
  // Predicated region
  $region26: #{net_forward.1} parent=0 // pred_check
    _
  $region27: #{net_forward.1} parent=0 // pred_check_branch
    %25 = sbr.rel (0) target = $region29
  $region28: #{net_forward.1} parent=0 // pred_region
    _
  $region29: #{net_forward.1} parent=0 // pred_fallthru
    _
  %v27 = vld [vmem:[%s0] sm:$0xff]
  %v28 = vld [vmem:[%s0 + $0x8] sm:$0xff]
  %v29 = vld [vmem:[%s0 + $0x10] sm:$0xff]
  %v30 = vld [vmem:[%s0 + $0x18] sm:$0xff]
  %v31 = vld [vmem:[%s0 + $0x20] sm:$0xff]
  %v32 = vld [vmem:[%s0 + $0x28] sm:$0xff]
  %v33 = vld [vmem:[%s0 + $0x30] sm:$0xff]
  %v34 = vld [vmem:[%s0 + $0x38] sm:$0xff]
  %v35 = vld [vmem:[%s0 + $0x40] sm:$0xff]
  %v36 = vld [vmem:[%s0 + $0x48] sm:$0xff]
  %v37 = vld [vmem:[%s0 + $0x50] sm:$0xff]
  %v38 = vld [vmem:[%s0 + $0x58] sm:$0xff]
  %v39 = vld [vmem:[%s0 + $0x60] sm:$0xff]
  %v40 = vld [vmem:[%s0 + $0x68] sm:$0xff]
  %v41 = vld [vmem:[%s0 + $0x70] sm:$0xff]
  %v42 = vld [vmem:[%s0 + $0x78] sm:$0xff]
  %v43 = vld [vmem:[%s0 + $0x80] sm:$0xff]
  %v44 = vld [vmem:[%s0 + $0x88] sm:$0xff]
  %v45 = vld [vmem:[%s0 + $0x90] sm:$0xff]
  %v46 = vld [vmem:[%s0 + $0x98] sm:$0xff]
  %v47 = vld [vmem:[%s0 + $0xa0] sm:$0xff]
  %v48 = vld [vmem:[%s0 + $0xa8] sm:$0xff]
  %v49 = vld [vmem:[%s0 + $0xb0] sm:$0xff]
  %v50 = vld [vmem:[%s0 + $0xb8] sm:$0xff]
  %v51 = vld [vmem:[%s0 + $0xc0] sm:$0xff]
  %v52 = vpack.c.bf16 %v28, %v27
  %v53 = vpack.c.bf16 %v30, %v29
  %v54 = vpack.c.bf16 %v32, %v31
  %v55 = vpack.c.bf16 %v34, %v33
  %v56 = vpack.c.bf16 %v36, %v35
  %v57 = vpack.c.bf16 %v38, %v37
  %v58 = vpack.c.bf16 %v40, %v39
  %v59 = vpack.c.bf16 %v42, %v41
  %v60 = vpack.c.bf16 %v44, %v43
  %v61 = vpack.c.bf16 %v46, %v45
  %v62 = vpack.c.bf16 %v48, %v47
  %v63 = vpack.c.bf16 %v50, %v49
  %v64 = vpack.c.bf16 %v51, %v51
  %v65 = vld [vmem:[%s1] sm:$0xf]
  %v66 = vld [vmem:[%s1 + $0x4] sm:$0xf]
  %v67 = vld [vmem:[%s1 + $0x8] sm:$0xf]
  %v68 = vld [vmem:[%s1 + $0xc] sm:$0xf]
  %v69 = vld [vmem:[%s2] sm:$0x1]
  %v71 = vperm.slane %v69, 0
  %v77 = vunpack.c.l.b16 %v65
  %v78 = vunpack.c.l.b16 %v66
  %v79 = vunpack.c.l.b16 %v67
  %v80 = vunpack.c.l.b16 %v68
  %v81 = vpack.c.b16 %v78, %v77
  %v82 = vpack.c.b16 %v80, %v79
  %vm85 = vcmask 261120
  %v87 = vsel %vm85, %v52, 0
  %v90 = vsel %vm85, %v53, 0
  %v93 = vsel %vm85, %v54, 0
  %v96 = vsel %vm85, %v55, 0
  %v99 = vsel %vm85, %v56, 0
  %v102 = vsel %vm85, %v57, 0
  %v105 = vsel %vm85, %v58, 0
  %v108 = vsel %vm85, %v59, 0
  %v111 = vsel %vm85, %v60, 0
  %v114 = vsel %vm85, %v61, 0
  %v117 = vsel %vm85, %v62, 0
  %v120 = vsel %vm85, %v63, 0
  %v123 = vsel %vm85, %v64, 0
  %125 = vmatpush.bf16.msra.mxu0 0
  %126 = vmatpush.bf16.msra.mxu0 0
  %127 = vmatpush.bf16.msra.mxu0 0
  %128 = vmatpush.bf16.msra.mxu0 0
  %129 = vmatpush.bf16.msra.mxu0 0
  %130 = vmatpush.bf16.msra.mxu0 0
  %131 = vmatpush.bf16.msra.mxu0 %v82
  %132 = vmatpush.bf16.msra.mxu0 %v81
  %133 = vmatmul.bf16.gmra.mxu0 %v87
  %v134 = vpop.f32.mrf.mxu0
  %v135 = vadd.f32 %v71, %v134
  %v136 = vpop.f32.mrf.mxu0
  %v137 = vadd.f32 %v71, %v136
  %138 = vmatmul.bf16.gmra.mxu0 %v90
  %v139 = vpop.f32.mrf.mxu0
  %v140 = vadd.f32 %v71, %v139
  %v141 = vpop.f32.mrf.mxu0
  %v142 = vadd.f32 %v71, %v141
  %143 = vmatmul.bf16.gmra.mxu0 %v93
  %v144 = vpop.f32.mrf.mxu0
  %v145 = vadd.f32 %v71, %v144
  %v146 = vpop.f32.mrf.mxu0
  %v147 = vadd.f32 %v71, %v146
  %148 = vmatmul.bf16.gmra.mxu0 %v96
  %v149 = vpop.f32.mrf.mxu0
  %v150 = vadd.f32 %v71, %v149
  %v151 = vpop.f32.mrf.mxu0
  %v152 = vadd.f32 %v71, %v151
  %153 = vmatmul.bf16.gmra.mxu0 %v99
  %v154 = vpop.f32.mrf.mxu0
  %v155 = vadd.f32 %v71, %v154
  %v156 = vpop.f32.mrf.mxu0
  %v157 = vadd.f32 %v71, %v156
  %158 = vmatmul.bf16.gmra.mxu0 %v102
  %v159 = vpop.f32.mrf.mxu0
  %v160 = vadd.f32 %v71, %v159
  %v161 = vpop.f32.mrf.mxu0
  %v162 = vadd.f32 %v71, %v161
  %163 = vmatmul.bf16.gmra.mxu0 %v105
  %v164 = vpop.f32.mrf.mxu0
  %v165 = vadd.f32 %v71, %v164
  %v166 = vpop.f32.mrf.mxu0
  %v167 = vadd.f32 %v71, %v166
  %168 = vmatmul.bf16.gmra.mxu0 %v108
  %v169 = vpop.f32.mrf.mxu0
  %v170 = vadd.f32 %v71, %v169
  %v171 = vpop.f32.mrf.mxu0
  %v172 = vadd.f32 %v71, %v171
  %173 = vmatmul.bf16.gmra.mxu0 %v111
  %v174 = vpop.f32.mrf.mxu0
  %v175 = vadd.f32 %v71, %v174
  %v176 = vpop.f32.mrf.mxu0
  %v177 = vadd.f32 %v71, %v176
  %178 = vmatmul.bf16.gmra.mxu0 %v114
  %v179 = vpop.f32.mrf.mxu0
  %v180 = vadd.f32 %v71, %v179
  %v181 = vpop.f32.mrf.mxu0
  %v182 = vadd.f32 %v71, %v181
  %183 = vmatmul.bf16.gmra.mxu0 %v117
  %v184 = vpop.f32.mrf.mxu0
  %v185 = vadd.f32 %v71, %v184
  %v186 = vpop.f32.mrf.mxu0
  %v187 = vadd.f32 %v71, %v186
  %188 = vmatmul.bf16.gmra.mxu0 %v120
  %v189 = vpop.f32.mrf.mxu0
  %v190 = vadd.f32 %v71, %v189
  %v191 = vpop.f32.mrf.mxu0
  %v192 = vadd.f32 %v71, %v191
  %193 = vmatmul.bf16.gmra.mxu0 %v123
  %v194 = vpop.f32.mrf.mxu0
  %v195 = vadd.f32 %v71, %v194
  %v196 = vpop.f32.mrf.mxu0
  %197 = vdwg.mxu0
  %v198 = vmax.f32 %v135, 0.0
  %v199 = vmax.f32 %v137, 0.0
  %v200 = vmax.f32 %v140, 0.0
  %v201 = vmax.f32 %v142, 0.0
  %v202 = vmax.f32 %v145, 0.0
  %v203 = vmax.f32 %v147, 0.0
  %v204 = vmax.f32 %v150, 0.0
  %v205 = vmax.f32 %v152, 0.0
  %v206 = vmax.f32 %v155, 0.0
  %v207 = vmax.f32 %v157, 0.0
  %v208 = vmax.f32 %v160, 0.0
  %v209 = vmax.f32 %v162, 0.0
  %v210 = vmax.f32 %v165, 0.0
  %v211 = vmax.f32 %v167, 0.0
  %v212 = vmax.f32 %v170, 0.0
  %v213 = vmax.f32 %v172, 0.0
  %v214 = vmax.f32 %v175, 0.0
  %v215 = vmax.f32 %v177, 0.0
  %v216 = vmax.f32 %v180, 0.0
  %v217 = vmax.f32 %v182, 0.0
  %v218 = vmax.f32 %v185, 0.0
  %v219 = vmax.f32 %v187, 0.0
  %v220 = vmax.f32 %v190, 0.0
  %v221 = vmax.f32 %v192, 0.0
  %v222 = vmax.f32 %v195, 0.0
  %v223 = vpack.c.bf16 %v199, %v198
  %v224 = vpack.c.bf16 %v201, %v200
  %v225 = vpack.c.bf16 %v203, %v202
  %v226 = vpack.c.bf16 %v205, %v204
  %v227 = vpack.c.bf16 %v207, %v206
  %v228 = vpack.c.bf16 %v209, %v208
  %v229 = vpack.c.bf16 %v211, %v210
  %v230 = vpack.c.bf16 %v213, %v212
  %v231 = vpack.c.bf16 %v215, %v214
  %v232 = vpack.c.bf16 %v217, %v216
  %v233 = vpack.c.bf16 %v219, %v218
  %v234 = vpack.c.bf16 %v221, %v220
  %v235 = vpack.c.bf16 %v222, %v222
  %v236 = vld [vmem:[%s3] sm:$0xf]
  %v237 = vld [vmem:[%s3 + $0x4] sm:$0xf]
  %v238 = vld [vmem:[%s3 + $0x8] sm:$0xf]
  %v239 = vld [vmem:[%s3 + $0xc] sm:$0xf]
  %v240 = vld [vmem:[%s3 + $0x10] sm:$0xf]
  %v241 = vld [vmem:[%s3 + $0x14] sm:$0xf]
  %v242 = vld [vmem:[%s3 + $0x18] sm:$0xf]
  %v243 = vld [vmem:[%s3 + $0x1c] sm:$0xf]
  %v244 = vld [vmem:[%s4] sm:$0x1]
  %v246 = vperm.slane %v244, 0
  %v256 = vunpack.c.l.b16 %v236
  %v257 = vunpack.c.l.b16 %v237
  %v258 = vunpack.c.l.b16 %v238
  %v259 = vunpack.c.l.b16 %v239
  %v260 = vunpack.c.l.b16 %v240
  %v261 = vunpack.c.l.b16 %v241
  %v262 = vunpack.c.l.b16 %v242
  %v263 = vunpack.c.l.b16 %v243
  %v264 = vpack.c.b16 %v257, %v256
  %v265 = vpack.c.b16 %v259, %v258
  %v266 = vpack.c.b16 %v261, %v260
  %v267 = vpack.c.b16 %v263, %v262
  %vm272 = vcmask 523264
  %v274 = vsel %vm272, %v223, 0
  %v277 = vsel %vm272, %v224, 0
  %v280 = vsel %vm272, %v225, 0
  %v283 = vsel %vm272, %v226, 0
  %v286 = vsel %vm272, %v227, 0
  %v289 = vsel %vm272, %v228, 0
  %v292 = vsel %vm272, %v229, 0
  %v295 = vsel %vm272, %v230, 0
  %v298 = vsel %vm272, %v231, 0
  %v301 = vsel %vm272, %v232, 0
  %v304 = vsel %vm272, %v233, 0
  %v307 = vsel %vm272, %v234, 0
  %v310 = vsel %vm272, %v235, 0
  %312 = vmatpush.bf16.msra.mxu0 0
  %313 = vmatpush.bf16.msra.mxu0 0
  %314 = vmatpush.bf16.msra.mxu0 0
  %315 = vmatpush.bf16.msra.mxu0 0
  %316 = vmatpush.bf16.msra.mxu0 %v267
  %317 = vmatpush.bf16.msra.mxu0 %v266
  %318 = vmatpush.bf16.msra.mxu0 %v265
  %319 = vmatpush.bf16.msra.mxu0 %v264
  %320 = vmatmul.bf16.gmra.mxu0 %v274
  %v321 = vpop.f32.mrf.mxu0
  %v322 = vadd.f32 %v246, %v321
  %v323 = vpop.f32.mrf.mxu0
  %v324 = vadd.f32 %v246, %v323
  %325 = vmatmul.bf16.gmra.mxu0 %v277
  %v326 = vpop.f32.mrf.mxu0
  %v327 = vadd.f32 %v246, %v326
  %v328 = vpop.f32.mrf.mxu0
  %v329 = vadd.f32 %v246, %v328
  %330 = vmatmul.bf16.gmra.mxu0 %v280
  %v331 = vpop.f32.mrf.mxu0
  %v332 = vadd.f32 %v246, %v331
  %v333 = vpop.f32.mrf.mxu0
  %v334 = vadd.f32 %v246, %v333
  %335 = vmatmul.bf16.gmra.mxu0 %v283
  %v336 = vpop.f32.mrf.mxu0
  %v337 = vadd.f32 %v246, %v336
  %v338 = vpop.f32.mrf.mxu0
  %v339 = vadd.f32 %v246, %v338
  %340 = vmatmul.bf16.gmra.mxu0 %v286
  %v341 = vpop.f32.mrf.mxu0
  %v342 = vadd.f32 %v246, %v341
  %v343 = vpop.f32.mrf.mxu0
  %v344 = vadd.f32 %v246, %v343
  %345 = vmatmul.bf16.gmra.mxu0 %v289
  %v346 = vpop.f32.mrf.mxu0
  %v347 = vadd.f32 %v246, %v346
  %v348 = vpop.f32.mrf.mxu0
  %v349 = vadd.f32 %v246, %v348
  %350 = vmatmul.bf16.gmra.mxu0 %v292
  %v351 = vpop.f32.mrf.mxu0
  %v352 = vadd.f32 %v246, %v351
  %v353 = vpop.f32.mrf.mxu0
  %v354 = vadd.f32 %v246, %v353
  %355 = vmatmul.bf16.gmra.mxu0 %v295
  %v356 = vpop.f32.mrf.mxu0
  %v357 = vadd.f32 %v246, %v356
  %v358 = vpop.f32.mrf.mxu0
  %v359 = vadd.f32 %v246, %v358
  %360 = vmatmul.bf16.gmra.mxu0 %v298
  %v361 = vpop.f32.mrf.mxu0
  %v362 = vadd.f32 %v246, %v361
  %v363 = vpop.f32.mrf.mxu0
  %v364 = vadd.f32 %v246, %v363
  %365 = vmatmul.bf16.gmra.mxu0 %v301
  %v366 = vpop.f32.mrf.mxu0
  %v367 = vadd.f32 %v246, %v366
  %v368 = vpop.f32.mrf.mxu0
  %v369 = vadd.f32 %v246, %v368
  %370 = vmatmul.bf16.gmra.mxu0 %v304
  %v371 = vpop.f32.mrf.mxu0
  %v372 = vadd.f32 %v246, %v371
  %v373 = vpop.f32.mrf.mxu0
  %v374 = vadd.f32 %v246, %v373
  %375 = vmatmul.bf16.gmra.mxu0 %v307
  %v376 = vpop.f32.mrf.mxu0
  %v377 = vadd.f32 %v246, %v376
  %v378 = vpop.f32.mrf.mxu0
  %v379 = vadd.f32 %v246, %v378
  %380 = vmatmul.bf16.gmra.mxu0 %v310
  %v381 = vpop.f32.mrf.mxu0
  %v382 = vadd.f32 %v246, %v381
  %v383 = vpop.f32.mrf.mxu0
  %384 = vdwg.mxu0
  %v385 = vmax.f32 %v322, 0.0
  %v386 = vmax.f32 %v324, 0.0
  %v387 = vmax.f32 %v327, 0.0
  %v388 = vmax.f32 %v329, 0.0
  %v389 = vmax.f32 %v332, 0.0
  %v390 = vmax.f32 %v334, 0.0
  %v391 = vmax.f32 %v337, 0.0
  %v392 = vmax.f32 %v339, 0.0
  %v393 = vmax.f32 %v342, 0.0
  %v394 = vmax.f32 %v344, 0.0
  %v395 = vmax.f32 %v347, 0.0
  %v396 = vmax.f32 %v349, 0.0
  %v397 = vmax.f32 %v352, 0.0
  %v398 = vmax.f32 %v354, 0.0
  %v399 = vmax.f32 %v357, 0.0
  %v400 = vmax.f32 %v359, 0.0
  %v401 = vmax.f32 %v362, 0.0
  %v402 = vmax.f32 %v364, 0.0
  %v403 = vmax.f32 %v367, 0.0
  %v404 = vmax.f32 %v369, 0.0
  %v405 = vmax.f32 %v372, 0.0
  %v406 = vmax.f32 %v374, 0.0
  %v407 = vmax.f32 %v377, 0.0
  %v408 = vmax.f32 %v379, 0.0
  %v409 = vmax.f32 %v382, 0.0
  %v410 = vpack.c.bf16 %v386, %v385
  %v411 = vpack.c.bf16 %v388, %v387
  %v412 = vpack.c.bf16 %v390, %v389
  %v413 = vpack.c.bf16 %v392, %v391
  %v414 = vpack.c.bf16 %v394, %v393
  %v415 = vpack.c.bf16 %v396, %v395
  %v416 = vpack.c.bf16 %v398, %v397
  %v417 = vpack.c.bf16 %v400, %v399
  %v418 = vpack.c.bf16 %v402, %v401
  %v419 = vpack.c.bf16 %v404, %v403
  %v420 = vpack.c.bf16 %v406, %v405
  %v421 = vpack.c.bf16 %v408, %v407
  %v422 = vpack.c.bf16 %v409, %v409
  %v423 = vld [vmem:[%s5] sm:$0xf]
  %v424 = vld [vmem:[%s5 + $0x4] sm:$0xf]
  %v425 = vld [vmem:[%s5 + $0x8] sm:$0xf]
  %v426 = vld [vmem:[%s5 + $0xc] sm:$0xf]
  %v427 = vld [vmem:[%s5 + $0x10] sm:$0xf]
  %v428 = vld [vmem:[%s5 + $0x14] sm:$0xf]
  %v429 = vld [vmem:[%s5 + $0x18] sm:$0xf]
  %v430 = vld [vmem:[%s5 + $0x1c] sm:$0xf]
  %v431 = vld [vmem:[%s6] sm:$0x1]
  %v433 = vperm.slane %v431, 0
  %v443 = vunpack.c.l.b16 %v423
  %v444 = vunpack.c.l.b16 %v424
  %v445 = vunpack.c.l.b16 %v425
  %v446 = vunpack.c.l.b16 %v426
  %v447 = vunpack.c.l.b16 %v427
  %v448 = vunpack.c.l.b16 %v428
  %v449 = vunpack.c.l.b16 %v429
  %v450 = vunpack.c.l.b16 %v430
  %v451 = vpack.c.b16 %v444, %v443
  %v452 = vpack.c.b16 %v446, %v445
  %v453 = vpack.c.b16 %v448, %v447
  %v454 = vpack.c.b16 %v450, %v449
  %v460 = vsel %vm272, %v410, 0
  %v463 = vsel %vm272, %v411, 0
  %v466 = vsel %vm272, %v412, 0
  %v469 = vsel %vm272, %v413, 0
  %v472 = vsel %vm272, %v414, 0
  %v475 = vsel %vm272, %v415, 0
  %v478 = vsel %vm272, %v416, 0
  %v481 = vsel %vm272, %v417, 0
  %v484 = vsel %vm272, %v418, 0
  %v487 = vsel %vm272, %v419, 0
  %v490 = vsel %vm272, %v420, 0
  %v493 = vsel %vm272, %v421, 0
  %v496 = vsel %vm272, %v422, 0
  %498 = vmatpush.bf16.msra.mxu0 0
  %499 = vmatpush.bf16.msra.mxu0 0
  %500 = vmatpush.bf16.msra.mxu0 0
  %501 = vmatpush.bf16.msra.mxu0 0
  %502 = vmatpush.bf16.msra.mxu0 %v454
  %503 = vmatpush.bf16.msra.mxu0 %v453
  %504 = vmatpush.bf16.msra.mxu0 %v452
  %505 = vmatpush.bf16.msra.mxu0 %v451
  %506 = vmatmul.bf16.gmra.mxu0 %v460
  %v507 = vpop.f32.mrf.mxu0
  %v508 = vadd.f32 %v433, %v507
  %v509 = vpop.f32.mrf.mxu0
  %v510 = vadd.f32 %v433, %v509
  %511 = vmatmul.bf16.gmra.mxu0 %v463
  %v512 = vpop.f32.mrf.mxu0
  %v513 = vadd.f32 %v433, %v512
  %v514 = vpop.f32.mrf.mxu0
  %v515 = vadd.f32 %v433, %v514
  %516 = vmatmul.bf16.gmra.mxu0 %v466
  %v517 = vpop.f32.mrf.mxu0
  %v518 = vadd.f32 %v433, %v517
  %v519 = vpop.f32.mrf.mxu0
  %v520 = vadd.f32 %v433, %v519
  %521 = vmatmul.bf16.gmra.mxu0 %v469
  %v522 = vpop.f32.mrf.mxu0
  %v523 = vadd.f32 %v433, %v522
  %v524 = vpop.f32.mrf.mxu0
  %v525 = vadd.f32 %v433, %v524
  %526 = vmatmul.bf16.gmra.mxu0 %v472
  %v527 = vpop.f32.mrf.mxu0
  %v528 = vadd.f32 %v433, %v527
  %v529 = vpop.f32.mrf.mxu0
  %v530 = vadd.f32 %v433, %v529
  %531 = vmatmul.bf16.gmra.mxu0 %v475
  %v532 = vpop.f32.mrf.mxu0
  %v533 = vadd.f32 %v433, %v532
  %v534 = vpop.f32.mrf.mxu0
  %v535 = vadd.f32 %v433, %v534
  %536 = vmatmul.bf16.gmra.mxu0 %v478
  %v537 = vpop.f32.mrf.mxu0
  %v538 = vadd.f32 %v433, %v537
  %v539 = vpop.f32.mrf.mxu0
  %v540 = vadd.f32 %v433, %v539
  %541 = vmatmul.bf16.gmra.mxu0 %v481
  %v542 = vpop.f32.mrf.mxu0
  %v543 = vadd.f32 %v433, %v542
  %v544 = vpop.f32.mrf.mxu0
  %v545 = vadd.f32 %v433, %v544
  %546 = vmatmul.bf16.gmra.mxu0 %v484
  %v547 = vpop.f32.mrf.mxu0
  %v548 = vadd.f32 %v433, %v547
  %v549 = vpop.f32.mrf.mxu0
  %v550 = vadd.f32 %v433, %v549
  %551 = vmatmul.bf16.gmra.mxu0 %v487
  %v552 = vpop.f32.mrf.mxu0
  %v553 = vadd.f32 %v433, %v552
  %v554 = vpop.f32.mrf.mxu0
  %v555 = vadd.f32 %v433, %v554
  %556 = vmatmul.bf16.gmra.mxu0 %v490
  %v557 = vpop.f32.mrf.mxu0
  %v558 = vadd.f32 %v433, %v557
  %v559 = vpop.f32.mrf.mxu0
  %v560 = vadd.f32 %v433, %v559
  %561 = vmatmul.bf16.gmra.mxu0 %v493
  %v562 = vpop.f32.mrf.mxu0
  %v563 = vadd.f32 %v433, %v562
  %v564 = vpop.f32.mrf.mxu0
  %v565 = vadd.f32 %v433, %v564
  %566 = vmatmul.bf16.gmra.mxu0 %v496
  %v567 = vpop.f32.mrf.mxu0
  %v568 = vadd.f32 %v433, %v567
  %v569 = vpop.f32.mrf.mxu0
  %570 = vdwg.mxu0
  %571 = vst [vmem:[%s7] sm:$0xff] %v508
  %572 = vst [vmem:[%s7 + $0x8] sm:$0xff] %v510
  %573 = vst [vmem:[%s7 + $0x10] sm:$0xff] %v513
  %574 = vst [vmem:[%s7 + $0x18] sm:$0xff] %v515
  %575 = vst [vmem:[%s7 + $0x20] sm:$0xff] %v518
  %576 = vst [vmem:[%s7 + $0x28] sm:$0xff] %v520
  %577 = vst [vmem:[%s7 + $0x30] sm:$0xff] %v523
  %578 = vst [vmem:[%s7 + $0x38] sm:$0xff] %v525
  %579 = vst [vmem:[%s7 + $0x40] sm:$0xff] %v528
  %580 = vst [vmem:[%s7 + $0x48] sm:$0xff] %v530
  %581 = vst [vmem:[%s7 + $0x50] sm:$0xff] %v533
  %582 = vst [vmem:[%s7 + $0x58] sm:$0xff] %v535
  %583 = vst [vmem:[%s7 + $0x60] sm:$0xff] %v538
  %584 = vst [vmem:[%s7 + $0x68] sm:$0xff] %v540
  %585 = vst [vmem:[%s7 + $0x70] sm:$0xff] %v543
  %586 = vst [vmem:[%s7 + $0x78] sm:$0xff] %v545
  %587 = vst [vmem:[%s7 + $0x80] sm:$0xff] %v548
  %588 = vst [vmem:[%s7 + $0x88] sm:$0xff] %v550
  %589 = vst [vmem:[%s7 + $0x90] sm:$0xff] %v553
  %590 = vst [vmem:[%s7 + $0x98] sm:$0xff] %v555
  %591 = vst [vmem:[%s7 + $0xa0] sm:$0xff] %v558
  %592 = vst [vmem:[%s7 + $0xa8] sm:$0xff] %v560
  %593 = vst [vmem:[%s7 + $0xb0] sm:$0xff] %v563
  %594 = vst [vmem:[%s7 + $0xb8] sm:$0xff] %v565
  %595 = vst [vmem:[%s7 + $0xc0] sm:$0xff] %v568
  // Predicated region
  $region30: #{net_forward.1} parent=0 // pred_check
    _
  $region31: #{net_forward.1} parent=0 // pred_check_branch
    %597 = sbr.rel (0) target = $region33
  $region32: #{net_forward.1} parent=0 // pred_region
    _
  $region33: #{net_forward.1} parent=0 // pred_fallthru
    _
  // Predicated region
  $region34: #{net_forward.1} parent=0 // pred_check
    _
  $region35: #{net_forward.1} parent=0 // pred_check_branch
    %599 = sbr.rel (0) target = $region37
  $region36: #{net_forward.1} parent=0 // pred_region
    _
  $region37: #{net_forward.1} parent=0 // pred_fallthru
    _

</llo_original>
